<compile_context>
chip_gen: v6e
topology: v6e:2x2x1
jax: 0.10.0
libtpu: 0.0.40
codegen_flags: <defaults>
</compile_context>

<pallas_src>
import functools

import jax
import jax.numpy as jnp
from jax import lax
from jax.experimental import pallas as pl
from jax.experimental.pallas import tpu as pltpu


def _round_up(x, m):
    return -(-x // m) * m


def _attention_kernel(q_ref, c_ref, win_ref, wmix_ref, wq_ref, out_ref, wts_ref,
                      *, compute_dtype):
    # q_ref:    (TB, TOL, D)  block of queries
    # c_ref:    (TB, QL,  D)  block of context
    # win_ref:  (D, D)        linear_in weight   (out_features, in_features)
    # wmix_ref: (D, D)        linear_out weight, columns [:, :D]  (acts on `mix`)
    # wq_ref:   (D, D)        linear_out weight, columns [:, D:]  (acts on q')
    # out_ref:  (TB, TOL, D)  attended output
    # wts_ref:  (TB, TOL, QL) attention weights
    TB, TOL, D = q_ref.shape
    QL = c_ref.shape[1]
    cd = compute_dtype

    # MXU operands in `compute_dtype` (bf16 by default == native MXU dtype),
    # accumulation in f32 via preferred_element_type.
    q = q_ref[...].astype(cd)            # (TB, TOL, D)
    c = c_ref[...].astype(cd)            # (TB, QL,  D)
    w_in = win_ref[...].astype(cd)       # (D, D)
    w_mix = wmix_ref[...].astype(cd)     # (D, D)
    w_q = wq_ref[...].astype(cd)         # (D, D)

    # y = x @ W^T without materializing W^T: contract the last dim of both operands.
    contract_last = (((1,), (1,)), ((), ()))

    # linear_in on the flattened (TB*TOL, D) rows -> one bigger MXU matmul per step.
    q2 = q.reshape(TB * TOL, D)
    qg2 = lax.dot_general(q2, w_in, contract_last,
                          preferred_element_type=jnp.float32)        # (TB*TOL, D) f32
    qg = qg2.reshape(TB, TOL, D)

    # attention scores: batched contraction over the feature dim (no context transpose).
    scores = jnp.einsum("bod,bqd->boq", qg.astype(cd), c,
                        preferred_element_type=jnp.float32)          # (TB, TOL, QL) f32

    # numerically stable softmax over the query-length axis, all in f32.
    # Exact divide: the denominator has only TB*TOL elements, so the exact path is free
    # and keeps the user-visible weights accurate.
    m = jnp.max(scores, axis=-1, keepdims=True)
    e = jnp.exp(scores - m)
    denom = jnp.sum(e, axis=-1, keepdims=True)
    weights = e / denom                                              # (TB, TOL, QL) f32

    # mix = weights @ context (batched, bf16 operands, f32 accumulation).
    mix = jnp.einsum("boq,bqd->bod", weights.astype(cd), c,
                     preferred_element_type=jnp.float32)             # (TB, TOL, D) f32

    # linear_out on cat([mix, q'], -1) == mix @ W_out[:, :D]^T + q' @ W_out[:, D:]^T,
    # flattened to (TB*TOL, D) rows.
    # TODO(synk): when D % 128 == 0 the two K=D matmuls could be fused into a single
    # K=2D matmul (tile-aligned concat) to better feed the 256-deep v6e/v7x MXU.
    mix2 = mix.reshape(TB * TOL, D)
    out2 = (lax.dot_general(mix2.astype(cd), w_mix, contract_last,
                            preferred_element_type=jnp.float32)
            + lax.dot_general(qg2.astype(cd), w_q, contract_last,
                              preferred_element_type=jnp.float32))   # (TB*TOL, D) f32
    out_ref[...] = jnp.tanh(out2).reshape(TB, TOL, D).astype(out_ref.dtype)
    # TODO(synk): for D/QL not multiples of 128 these stores are masked (vst.msk); a
    # lane-dense repack of the outputs would help store-bound v5e but changes layout.
    wts_ref[...] = weights.astype(wts_ref.dtype)


def _pick_blocks(B, OL, QL, D, vmem_budget_bytes):
    """Pick (block_b, tile_ol): largest block (by flattened rows) whose *padded* VMEM
    footprint fits the budget while keeping >= min(8, max_steps) grid steps for the
    software pipeline and megacore sharding."""
    Dp = _round_up(D, 128)            # lane padding of the feature dim
    QLp = _round_up(QL, 128)          # lane padding of the scores/weights last dim
    ql8 = _round_up(QL, 8)

    # Candidate OL tiles: multiples of 8 dividing OL (sublane constraint), or OL itself.
    ol_opts = sorted({d for d in range(1, OL + 1)
                      if OL % d == 0 and (d % 8 == 0 or d == OL)})
    b_opts = sorted({d for d in range(1, B + 1) if B % d == 0})
    max_steps = B * (OL // ol_opts[0])
    min_steps = min(8, max_steps)

    def footprint(tb, tol):
        tol8 = _round_up(tol, 8)
        # Pipelined blocks (query, out, context, weights), f32, double-buffered.
        pipelined = 2 * 4 * tb * (2 * tol8 * Dp + ql8 * Dp + tol8 * QLp)
        # Three (D, D) weight blocks (double-buffer bound) + their bf16 working copies.
        w_fixed = 2 * 4 * 3 * _round_up(D, 8) * Dp + 2 * 3 * _round_up(D, 16) * Dp
        # In-kernel intermediates (qg, mix, scores/e/weights + bf16 copies), padded.
        interm = 6 * tb * tol8 * (3 * Dp + 3 * QLp)
        return pipelined + w_fixed + interm

    best, best_rows = (b_opts[0], ol_opts[0]), 0
    for tol in ol_opts:
        for tb in b_opts:
            if footprint(tb, tol) > vmem_budget_bytes:
                continue
            if (B // tb) * (OL // tol) < min_steps:
                continue
            if tb * tol > best_rows:
                best, best_rows = (tb, tol), tb * tol
    return best


@functools.partial(jax.jit, static_argnames=("block_b", "tile_ol", "compute_dtype"))
def attention_forward(query, context, w_in, w_out, *, block_b=None, tile_ol=None,
                      compute_dtype=jnp.bfloat16):
    """query: (B, OL, D), context: (B, QL, D), w_in: (D, D), w_out: (D, 2D).

    Returns (output [B, OL, D], attention_weights [B, OL, QL])."""
    B, OL, D = query.shape
    QL = context.shape[1]
    assert w_in.shape == (D, D) and w_out.shape == (D, 2 * D)

    # Split linear_out's (out, in) weight into its `mix` / `query` halves on the host
    # (free layout plumbing; avoids a lane-dim slice at offset D inside the kernel).
    w_out_mix = w_out[:, :D]
    w_out_q = w_out[:, D:]

    # Generation-aware VMEM budgeting (128 MiB on v5e/v6e, 64 MiB on v7x).
    try:
        vmem_cap = int(pltpu.get_tpu_info().vmem_capacity_bytes)
    except Exception:
        vmem_cap = 64 * 1024 * 1024  # conservative fallback
    vmem_budget = int(vmem_cap * 0.5)
    vmem_limit = int(vmem_cap * 0.85)

    auto_b, auto_ol = _pick_blocks(B, OL, QL, D, vmem_budget)
    if block_b is None:
        block_b = auto_b
    if tile_ol is None:
        tile_ol = auto_ol
    assert B % block_b == 0 and OL % tile_ol == 0

    out_shapes = (
        jax.ShapeDtypeStruct((B, OL, D), jnp.float32),
        jax.ShapeDtypeStruct((B, OL, QL), jnp.float32),
    )

    grid_spec = pltpu.PrefetchScalarGridSpec(
        num_scalar_prefetch=0,
        grid=(B // block_b, OL // tile_ol),
        in_specs=[
            pl.BlockSpec((block_b, tile_ol, D), lambda b, o: (b, o, 0)),   # query
            pl.BlockSpec((block_b, QL, D), lambda b, o: (b, 0, 0)),        # context
            # Grid-invariant weights: constant index_map -> DMA'd once, stay resident.
            # TODO(synk): pipeline_mode=pl.Buffered(1) would drop the redundant second
            # buffer for very large D.
            pl.BlockSpec((D, D), lambda b, o: (0, 0)),                     # linear_in W
            pl.BlockSpec((D, D), lambda b, o: (0, 0)),                     # linear_out (mix half)
            pl.BlockSpec((D, D), lambda b, o: (0, 0)),                     # linear_out (query half)
        ],
        out_specs=[
            pl.BlockSpec((block_b, tile_ol, D), lambda b, o: (b, o, 0)),
            pl.BlockSpec((block_b, tile_ol, QL), lambda b, o: (b, o, 0)),
        ],
    )

    kernel = functools.partial(_attention_kernel, compute_dtype=compute_dtype)
    return pl.pallas_call(
        kernel,
        out_shape=out_shapes,
        grid_spec=grid_spec,
        compiler_params=pltpu.CompilerParams(
            dimension_semantics=("parallel", "parallel"),
            vmem_limit_bytes=vmem_limit,
        ),
    )(query, context, w_in, w_out_mix, w_out_q)


def attention_reference(query, context, w_in, w_out):
    """Pure-JAX reference matching the PyTorch module exactly (full f32 math)."""
    hp = jax.lax.Precision.HIGHEST
    qg = jnp.einsum("bod,ed->boe", query, w_in, precision=hp)
    scores = jnp.einsum("bod,bqd->boq", qg, context, precision=hp)
    weights = jax.nn.softmax(scores, axis=-1)
    mix = jnp.einsum("boq,bqd->bod", weights, context, precision=hp)
    combined = jnp.concatenate([mix, qg], axis=-1)
    out = jnp.tanh(jnp.einsum("boc,dc->bod", combined, w_out, precision=hp))
    return out, weights


def attention_reference_matched(query, context, w_in, w_out, compute_dtype):
    """Reference with the same mixed-precision structure as the kernel (compute_dtype
    MXU operands, f32 accumulation and softmax) — for a tight correctness check."""
    cd = compute_dtype
    f32 = jnp.float32
    D = w_in.shape[0]
    qg = jnp.einsum("bod,ed->boe", query.astype(cd), w_in.astype(cd),
                    preferred_element_type=f32)
    scores = jnp.einsum("bod,bqd->boq", qg.astype(cd), context.astype(cd),
                        preferred_element_type=f32)
    weights = jax.nn.softmax(scores, axis=-1)
    mix = jnp.einsum("boq,bqd->bod", weights.astype(cd), context.astype(cd),
                     preferred_element_type=f32)
    pre = (jnp.einsum("bod,ed->boe", mix.astype(cd), w_out[:, :D].astype(cd),
                      preferred_element_type=f32)
           + jnp.einsum("bod,ed->boe", qg.astype(cd), w_out[:, D:].astype(cd),
                        preferred_element_type=f32))
    return jnp.tanh(pre), weights


if __name__ == "__main__":
    B, OL, QL, D = 2, 8, 8, 32

    key = jax.random.PRNGKey(0)
    k_q, k_c, k_win, k_wout = jax.random.split(key, 4)

    query = jax.random.normal(k_q, (B, OL, D), dtype=jnp.float32)
    context = jax.random.normal(k_c, (B, QL, D), dtype=jnp.float32)
    # Deterministic parameter init (Kaiming-uniform-like bound, PyTorch Linear layout (out, in)).
    bound_in = 1.0 / (D ** 0.5)
    bound_out = 1.0 / ((2 * D) ** 0.5)
    w_in = jax.random.uniform(k_win, (D, D), jnp.float32, -bound_in, bound_in)
    w_out = jax.random.uniform(k_wout, (D, 2 * D), jnp.float32, -bound_out, bound_out)

    out, weights = attention_forward(query, context, w_in, w_out)
    out = jax.block_until_ready(out)
    weights = jax.block_until_ready(weights)
    assert out.shape == (B, OL, D) and weights.shape == (B, OL, QL)

    # Tight check: reference with the same mixed-precision structure (bf16 MXU operands,
    # f32 accumulation/softmax) — differences are only accumulation order / ulps.
    m_out, m_w = attention_reference_matched(query, context, w_in, w_out, jnp.bfloat16)
    assert jnp.allclose(out, m_out, atol=1e-3, rtol=1e-3)
    assert jnp.allclose(weights, m_w, atol=1e-3, rtol=1e-3)

    # Sanity check against the exact f32 reference (looser: the deliberate bf16 operand
    # rounding on the MXU is the only error source — the softmax reciprocal is exact).
    ref_out, ref_w = attention_reference(query, context, w_in, w_out)
    assert jnp.allclose(out, ref_out, atol=5e-2, rtol=5e-2)
    assert jnp.allclose(weights, ref_w, atol=5e-2, rtol=5e-2)

    print("KERNEL_OK")
</pallas_src>

<mosaic_0001>
module attributes {stable_mosaic.version = 11 : i64} {
  func.func @_attention_kernel(%arg0: i32, %arg1: i32, %arg2: memref<1x8x32xf32, #tpu.memory_space<vmem>>, %arg3: memref<1x8x32xf32, #tpu.memory_space<vmem>>, %arg4: memref<32x32xf32, #tpu.memory_space<vmem>>, %arg5: memref<32x32xf32, #tpu.memory_space<vmem>>, %arg6: memref<32x32xf32, #tpu.memory_space<vmem>>, %arg7: memref<1x8x32xf32, #tpu.memory_space<vmem>>, %arg8: memref<1x8x8xf32, #tpu.memory_space<vmem>>) attributes {dimension_semantics = [#tpu.dimension_semantics<parallel>, #tpu.dimension_semantics<parallel>], iteration_bounds = array<i64: 2, 1>, scalar_prefetch = 0 : i64, scratch_operands = 0 : i64, tpu.core_type = #tpu.core_type<tc>, window_params = [{transform_indices = @transform_0, window_bounds = array<i64: 1, 8, 32>}, {transform_indices = @transform_1, window_bounds = array<i64: 1, 8, 32>}, {pipeline_mode = #tpu.pipeline_mode<synchronous>, transform_indices = @transform_2, window_bounds = array<i64: 32, 32>}, {pipeline_mode = #tpu.pipeline_mode<synchronous>, transform_indices = @transform_3, window_bounds = array<i64: 32, 32>}, {pipeline_mode = #tpu.pipeline_mode<synchronous>, transform_indices = @transform_4, window_bounds = array<i64: 32, 32>}, {transform_indices = @transform_5, window_bounds = array<i64: 1, 8, 32>}, {transform_indices = @transform_6, window_bounds = array<i64: 1, 8, 8>}]} {
    %c0 = arith.constant 0 : index
    %c0_0 = arith.constant 0 : index
    %c0_1 = arith.constant 0 : index
    %0 = vector.load %arg2[%c0, %c0_0, %c0_1] : memref<1x8x32xf32, #tpu.memory_space<vmem>>, vector<1x8x32xf32>
    %1 = arith.truncf %0 : vector<1x8x32xf32> to vector<1x8x32xbf16>
    %c0_2 = arith.constant 0 : index
    %c0_3 = arith.constant 0 : index
    %c0_4 = arith.constant 0 : index
    %2 = vector.load %arg3[%c0_2, %c0_3, %c0_4] : memref<1x8x32xf32, #tpu.memory_space<vmem>>, vector<1x8x32xf32>
    %3 = arith.truncf %2 : vector<1x8x32xf32> to vector<1x8x32xbf16>
    %c0_5 = arith.constant 0 : index
    %c0_6 = arith.constant 0 : index
    %4 = vector.load %arg4[%c0_5, %c0_6] : memref<32x32xf32, #tpu.memory_space<vmem>>, vector<32x32xf32>
    %5 = arith.truncf %4 : vector<32x32xf32> to vector<32x32xbf16>
    %c0_7 = arith.constant 0 : index
    %c0_8 = arith.constant 0 : index
    %6 = vector.load %arg5[%c0_7, %c0_8] : memref<32x32xf32, #tpu.memory_space<vmem>>, vector<32x32xf32>
    %7 = arith.truncf %6 : vector<32x32xf32> to vector<32x32xbf16>
    %c0_9 = arith.constant 0 : index
    %c0_10 = arith.constant 0 : index
    %8 = vector.load %arg6[%c0_9, %c0_10] : memref<32x32xf32, #tpu.memory_space<vmem>>, vector<32x32xf32>
    %9 = arith.truncf %8 : vector<32x32xf32> to vector<32x32xbf16>
    %10 = vector.shape_cast %1 : vector<1x8x32xbf16> to vector<8x32xbf16>
    %cst = arith.constant dense<0.000000e+00> : vector<8x32xf32>
    %11 = tpu.matmul %10, %5, %cst {dimension_numbers = #tpu.dot_dimension_numbers<[1], [1], [0], [0], [0, 0, 1, 0], [], []>} : vector<8x32xbf16>, vector<32x32xbf16>, vector<8x32xf32> -> vector<8x32xf32>
    %12 = vector.shape_cast %11 : vector<8x32xf32> to vector<1x8x32xf32>
    %13 = arith.truncf %12 : vector<1x8x32xf32> to vector<1x8x32xbf16>
    "tpu.trace_start"() <{level = 10 : i32, message = "bod,bqd->boq"}> : () -> ()
    %cst_11 = arith.constant dense<0.000000e+00> : vector<1x8x8xf32>
    %14 = tpu.matmul %13, %3, %cst_11 {dimension_numbers = #tpu.dot_dimension_numbers<[2], [2], [1], [1], [0, 0, 0, 1, 1, 1], [0], [0]>} : vector<1x8x32xbf16>, vector<1x8x32xbf16>, vector<1x8x8xf32> -> vector<1x8x8xf32>
    "tpu.trace_stop"() : () -> ()
    %cst_12 = arith.constant dense<0xFF800000> : vector<1x8xf32>
    %15 = vector.multi_reduction <maximumf>, %14, %cst_12 [2] : vector<1x8x8xf32> to vector<1x8xf32>
    %16 = vector.shape_cast %15 : vector<1x8xf32> to vector<1x8x1xf32>
    %17 = vector.broadcast %16 : vector<1x8x1xf32> to vector<1x8x8xf32>
    %18 = arith.subf %14, %17 : vector<1x8x8xf32>
    %19 = math.exp %18 : vector<1x8x8xf32>
    %cst_13 = arith.constant dense<0.000000e+00> : vector<1x8xf32>
    %20 = vector.multi_reduction <add>, %19, %cst_13 [2] : vector<1x8x8xf32> to vector<1x8xf32>
    %21 = vector.shape_cast %20 : vector<1x8xf32> to vector<1x8x1xf32>
    %22 = vector.broadcast %21 : vector<1x8x1xf32> to vector<1x8x8xf32>
    %23 = arith.divf %19, %22 : vector<1x8x8xf32>
    %24 = arith.truncf %23 : vector<1x8x8xf32> to vector<1x8x8xbf16>
    "tpu.trace_start"() <{level = 10 : i32, message = "boq,bqd->bod"}> : () -> ()
    %cst_14 = arith.constant dense<0.000000e+00> : vector<1x8x32xf32>
    %25 = tpu.matmul %24, %3, %cst_14 {dimension_numbers = #tpu.dot_dimension_numbers<[2], [1], [1], [2], [0, 0, 0, 1, 1, 2], [0], [0]>} : vector<1x8x8xbf16>, vector<1x8x32xbf16>, vector<1x8x32xf32> -> vector<1x8x32xf32>
    "tpu.trace_stop"() : () -> ()
    %26 = vector.shape_cast %25 : vector<1x8x32xf32> to vector<8x32xf32>
    %27 = arith.truncf %26 : vector<8x32xf32> to vector<8x32xbf16>
    %cst_15 = arith.constant dense<0.000000e+00> : vector<8x32xf32>
    %28 = tpu.matmul %27, %7, %cst_15 {dimension_numbers = #tpu.dot_dimension_numbers<[1], [1], [0], [0], [0, 0, 1, 0], [], []>} : vector<8x32xbf16>, vector<32x32xbf16>, vector<8x32xf32> -> vector<8x32xf32>
    %29 = arith.truncf %11 : vector<8x32xf32> to vector<8x32xbf16>
    %cst_16 = arith.constant dense<0.000000e+00> : vector<8x32xf32>
    %30 = tpu.matmul %29, %9, %cst_16 {dimension_numbers = #tpu.dot_dimension_numbers<[1], [1], [0], [0], [0, 0, 1, 0], [], []>} : vector<8x32xbf16>, vector<32x32xbf16>, vector<8x32xf32> -> vector<8x32xf32>
    %31 = arith.addf %28, %30 : vector<8x32xf32>
    %32 = math.tanh %31 : vector<8x32xf32>
    %33 = vector.shape_cast %32 : vector<8x32xf32> to vector<1x8x32xf32>
    %c0_17 = arith.constant 0 : index
    %c0_18 = arith.constant 0 : index
    %c0_19 = arith.constant 0 : index
    %34 = vector.load %arg7[%c0_17, %c0_18, %c0_19] : memref<1x8x32xf32, #tpu.memory_space<vmem>>, vector<1x8x32xf32>
    tpu.vector_store %arg7[%c0_17, %c0_18, %c0_19], %33 {strides = array<i32>} : memref<1x8x32xf32, #tpu.memory_space<vmem>>, vector<1x8x32xf32>,
    %c0_20 = arith.constant 0 : index
    %c0_21 = arith.constant 0 : index
    %c0_22 = arith.constant 0 : index
    %35 = vector.load %arg8[%c0_20, %c0_21, %c0_22] : memref<1x8x8xf32, #tpu.memory_space<vmem>>, vector<1x8x8xf32>
    tpu.vector_store %arg8[%c0_20, %c0_21, %c0_22], %23 {strides = array<i32>} : memref<1x8x8xf32, #tpu.memory_space<vmem>>, vector<1x8x8xf32>,
    return
  }
  func.func @transform_0(%arg0: i32, %arg1: i32) -> (i32, i32, i32) {
    %c0_i32 = arith.constant 0 : i32
    %c0_i32_0 = arith.constant 0 : i32
    return %arg0, %arg1, %c0_i32 : i32, i32, i32
  }
  func.func @transform_1(%arg0: i32, %arg1: i32) -> (i32, i32, i32) {
    %c0_i32 = arith.constant 0 : i32
    %c0_i32_0 = arith.constant 0 : i32
    %c0_i32_1 = arith.constant 0 : i32
    return %arg0, %c0_i32, %c0_i32_0 : i32, i32, i32
  }
  func.func @transform_2(%arg0: i32, %arg1: i32) -> (i32, i32) {
    %c0_i32 = arith.constant 0 : i32
    %c0_i32_0 = arith.constant 0 : i32
    %c0_i32_1 = arith.constant 0 : i32
    return %c0_i32, %c0_i32_0 : i32, i32
  }
  func.func @transform_3(%arg0: i32, %arg1: i32) -> (i32, i32) {
    %c0_i32 = arith.constant 0 : i32
    %c0_i32_0 = arith.constant 0 : i32
    %c0_i32_1 = arith.constant 0 : i32
    return %c0_i32, %c0_i32_0 : i32, i32
  }
  func.func @transform_4(%arg0: i32, %arg1: i32) -> (i32, i32) {
    %c0_i32 = arith.constant 0 : i32
    %c0_i32_0 = arith.constant 0 : i32
    %c0_i32_1 = arith.constant 0 : i32
    return %c0_i32, %c0_i32_0 : i32, i32
  }
  func.func @transform_5(%arg0: i32, %arg1: i32) -> (i32, i32, i32) {
    %c0_i32 = arith.constant 0 : i32
    %c0_i32_0 = arith.constant 0 : i32
    return %arg0, %arg1, %c0_i32 : i32, i32, i32
  }
  func.func @transform_6(%arg0: i32, %arg1: i32) -> (i32, i32, i32) {
    %c0_i32 = arith.constant 0 : i32
    %c0_i32_0 = arith.constant 0 : i32
    return %arg0, %arg1, %c0_i32 : i32, i32, i32
  }
}

</mosaic_0001>

<llo_original>
// kernel: attention_forward.1
$region0: #{attention_forward.1}
  #allocation0 [shape = 'u32[]', space=smem, size = 0x4, offset = 0x4, fixed_abs, tag = 'smem constant byte address 0x4 - core index']
  #allocation1 [shape = 'u32[144,128]{1,0:T(1,128)}', space=vmem, size = 0x12000, scoped, tag = 'internal scratch']
  %s0 = inlined_call_operand.vmem [shape: f32[2,8,32], index: 0, kind: input, shape index: {}]
  %s1 = inlined_call_operand.vmem [shape: f32[2,8,32], index: 1, kind: input, shape index: {}]
  %s2 = inlined_call_operand.vmem [shape: f32[32,32], index: 2, kind: input, shape index: {}]
  %s3 = inlined_call_operand.vmem [shape: f32[32,32], index: 3, kind: input, shape index: {}]
  %s4 = inlined_call_operand.vmem [shape: f32[32,32], index: 4, kind: input, shape index: {}]
  %s5 = inlined_call_operand.hbm [shape: f32[2,8,32], index: 5, kind: output, shape index: {0}]
  %s6 = inlined_call_operand.hbm [shape: f32[2,8,8], index: 6, kind: output, shape index: {1}]
  %7 = xla_tuple %s5, %s6
  %s8 = sld [smem:[#allocation0]]
  $region61: #{attention_forward.1} parent=0
    _
  %s10 = ssub.s32 1, %s8
  %s11 = scalar_select 0, %s10, %s8
  $region1: #{attention_forward.1} parent=0
    #allocation2 [shape = 'u8[8192]{0}', space=vmem, size = 0x2000, scoped, tag = 'output window, operand 0']
    #allocation3 [shape = 's32[2]{0}', space=sflag, size = 0x8, scoped, tag = 'scoped memory for attention_forward.1']
    #allocation4 [shape = 'u8[8192]{0}', space=vmem, size = 0x2000, scoped, tag = 'output window, operand 1']
    #allocation5 [shape = 's32[2]{0}', space=sflag, size = 0x8, scoped, tag = 'scoped memory for attention_forward.1']
    %12 = vsyncpa [#allocation3], 0
    %s13 = scalar_lea.sflag [#allocation3], 1
    %14 = vsyncpa %s13, 0
    %15 = vsyncpa [#allocation5], 0
    %s16 = scalar_lea.sflag [#allocation5], 1
    %17 = vsyncpa %s16, 0
    loop: start=0, step=1, limit=4
    $region2: #{attention_forward.1} parent=1 // loop_pre_header
      _
    $region3: #{attention_forward.1} parent=1 // loop_header
      %s19 = sphi 0, %s23
      %p20 = scmp.ge.s32.totalorder %s19, 4
      %s26 = sphi 0, %s38
      %s27 = sphi 0, %s34
      %s28 = sphi 0, %s26
      %s29 = sphi 0, %s27
      %s30 = sphi 0, %s28
      %s31 = sphi 0, %s29
      %s43 = sphi 0, %s45
      %s46 = sphi 0, %s43
      %s47 = sphi 0, %s46
      %s63 = sphi 0, %s47
      %s69 = sphi 0, %s71
      %s72 = sphi 0, %s69
      %s73 = sphi 0, %s72
      %s89 = sphi 0, %s73
      %s93 = sphi 0, %s93
      %s95 = sphi 0, %s93
      %s96 = sphi 0, %s95
      %s110 = sphi 0, %s96
      %s114 = sphi 0, %s114
      %s116 = sphi 0, %s114
      %s117 = sphi 0, %s116
      %s131 = sphi 0, %s117
      %s135 = sphi 0, %s135
      %s137 = sphi 0, %s135
      %s138 = sphi 0, %s137
      %s152 = sphi 0, %s138
      %s160 = sphi 0, %s162
      %s163 = sphi 0, %s160
      %s164 = sphi 0, %s163
      %s180 = sphi 0, %s164
      %s188 = sphi 0, %s190
      %s191 = sphi 0, %s188
      %s192 = sphi 0, %s191
      %s208 = sphi 0, %s192
    $region4: #{attention_forward.1} parent=1 // loop_header_branch
      %22 = sbr.rel (%p20) target = $region8
    $region5: #{attention_forward.1} parent=1 // loop_body
      %s24 = ssub.s32 %s19, 1
      %s25 = ssub.s32 %s19, 2
      %s32 = sadd.s32 1, %s27
      %p33 = scmp.ge.s32.totalorder %s32, 1
      %s34 = scalar_select %p33, 0, %s32
      %s35 = sadd.s32 1, %s26
      %s36 = scalar_select %p33, %s35, %s26
      %p37 = scmp.ge.s32.totalorder %s36, 2
      %s38 = scalar_select %p37, 0, %s36
      %s39 = ssub.s32 %s26, %s38
      %s40 = ssub.s32 %s27, %s34
      %s41 = sor.u32 %s39, %s40
      %p42 = scmp.eq.s32.totalorder %s41, 0
      %s44 = sadd.s32 %s43, 1
      %s45 = scalar_select %p42, %s43, %s44
      %p48 = pneg %p42
      %p49 = scmp.eq.s32.totalorder %s19, 1
      %p50 = por %p48, %p49
      %p51 = scmp.ne.s32.totalorder %s43, %s46
      %p52 = scmp.eq.s32.totalorder %s19, 0
      %p53 = por %p51, %p52
      %p54 = scmp.ne.s32.totalorder %s43, %s46
      %p55 = scmp.eq.s32.totalorder %s24, 1
      %p56 = por %p54, %p55
      %p57 = scmp.ne.s32.totalorder %s46, %s47
      %p58 = scmp.eq.s32.totalorder %s24, 0
      %p59 = por %p57, %p58
      %p60 = scmp.ne.s32.totalorder %s46, %s47
      %p61 = scmp.eq.s32.totalorder %s25, 1
      %p62 = por %p60, %p61
      %p64 = scmp.ne.s32.totalorder %s47, %s63
      %p65 = scmp.eq.s32.totalorder %s25, 0
      %p66 = por %p64, %p65
      %s67 = ssub.s32 %s26, %s38
      %p68 = scmp.eq.s32.totalorder %s67, 0
      %s70 = sadd.s32 %s69, 1
      %s71 = scalar_select %p68, %s69, %s70
      %p74 = pneg %p68
      %p75 = scmp.eq.s32.totalorder %s19, 1
      %p76 = por %p74, %p75
      %p77 = scmp.ne.s32.totalorder %s69, %s72
      %p78 = scmp.eq.s32.totalorder %s19, 0
      %p79 = por %p77, %p78
      %p80 = scmp.ne.s32.totalorder %s69, %s72
      %p81 = scmp.eq.s32.totalorder %s24, 1
      %p82 = por %p80, %p81
      %p83 = scmp.ne.s32.totalorder %s72, %s73
      %p84 = scmp.eq.s32.totalorder %s24, 0
      %p85 = por %p83, %p84
      %p86 = scmp.ne.s32.totalorder %s72, %s73
      %p87 = scmp.eq.s32.totalorder %s25, 1
      %p88 = por %p86, %p87
      %p90 = scmp.ne.s32.totalorder %s73, %s89
      %p91 = scmp.eq.s32.totalorder %s25, 0
      %p92 = por %p90, %p91
      %s94 = sadd.s32 %s93, 1
      %p97 = scmp.eq.s32.totalorder %s19, 1
      %p98 = scmp.ne.s32.totalorder %s93, %s95
      %p99 = scmp.eq.s32.totalorder %s19, 0
      %p100 = por %p98, %p99
      %p101 = scmp.ne.s32.totalorder %s93, %s95
      %p102 = scmp.eq.s32.totalorder %s24, 1
      %p103 = por %p101, %p102
      %p104 = scmp.ne.s32.totalorder %s95, %s96
      %p105 = scmp.eq.s32.totalorder %s24, 0
      %p106 = por %p104, %p105
      %p107 = scmp.ne.s32.totalorder %s95, %s96
      %p108 = scmp.eq.s32.totalorder %s25, 1
      %p109 = por %p107, %p108
      %p111 = scmp.ne.s32.totalorder %s96, %s110
      %p112 = scmp.eq.s32.totalorder %s25, 0
      %p113 = por %p111, %p112
      %s115 = sadd.s32 %s114, 1
      %p118 = scmp.eq.s32.totalorder %s19, 1
      %p119 = scmp.ne.s32.totalorder %s114, %s116
      %p120 = scmp.eq.s32.totalorder %s19, 0
      %p121 = por %p119, %p120
      %p122 = scmp.ne.s32.totalorder %s114, %s116
      %p123 = scmp.eq.s32.totalorder %s24, 1
      %p124 = por %p122, %p123
      %p125 = scmp.ne.s32.totalorder %s116, %s117
      %p126 = scmp.eq.s32.totalorder %s24, 0
      %p127 = por %p125, %p126
      %p128 = scmp.ne.s32.totalorder %s116, %s117
      %p129 = scmp.eq.s32.totalorder %s25, 1
      %p130 = por %p128, %p129
      %p132 = scmp.ne.s32.totalorder %s117, %s131
      %p133 = scmp.eq.s32.totalorder %s25, 0
      %p134 = por %p132, %p133
      %s136 = sadd.s32 %s135, 1
      %p139 = scmp.eq.s32.totalorder %s19, 1
      %p140 = scmp.ne.s32.totalorder %s135, %s137
      %p141 = scmp.eq.s32.totalorder %s19, 0
      %p142 = por %p140, %p141
      %p143 = scmp.ne.s32.totalorder %s135, %s137
      %p144 = scmp.eq.s32.totalorder %s24, 1
      %p145 = por %p143, %p144
      %p146 = scmp.ne.s32.totalorder %s137, %s138
      %p147 = scmp.eq.s32.totalorder %s24, 0
      %p148 = por %p146, %p147
      %p149 = scmp.ne.s32.totalorder %s137, %s138
      %p150 = scmp.eq.s32.totalorder %s25, 1
      %p151 = por %p149, %p150
      %p153 = scmp.ne.s32.totalorder %s138, %s152
      %p154 = scmp.eq.s32.totalorder %s25, 0
      %p155 = por %p153, %p154
      %s156 = ssub.s32 %s26, %s38
      %s157 = ssub.s32 %s27, %s34
      %s158 = sor.u32 %s156, %s157
      %p159 = scmp.eq.s32.totalorder %s158, 0
      %s161 = sadd.s32 %s160, 1
      %s162 = scalar_select %p159, %s160, %s161
      %p165 = pneg %p159
      %p166 = scmp.eq.s32.totalorder %s19, 1
      %p167 = por %p165, %p166
      %p168 = scmp.ne.s32.totalorder %s160, %s163
      %p169 = scmp.eq.s32.totalorder %s19, 0
      %p170 = por %p168, %p169
      %p171 = scmp.ne.s32.totalorder %s160, %s163
      %p172 = scmp.eq.s32.totalorder %s24, 1
      %p173 = por %p171, %p172
      %p174 = scmp.ne.s32.totalorder %s163, %s164
      %p175 = scmp.eq.s32.totalorder %s24, 0
      %p176 = por %p174, %p175
      %p177 = scmp.ne.s32.totalorder %s163, %s164
      %p178 = scmp.eq.s32.totalorder %s25, 1
      %p179 = por %p177, %p178
      %p181 = scmp.ne.s32.totalorder %s164, %s180
      %p182 = scmp.eq.s32.totalorder %s25, 0
      %p183 = por %p181, %p182
      %s184 = ssub.s32 %s26, %s38
      %s185 = ssub.s32 %s27, %s34
      %s186 = sor.u32 %s184, %s185
      %p187 = scmp.eq.s32.totalorder %s186, 0
      %s189 = sadd.s32 %s188, 1
      %s190 = scalar_select %p187, %s188, %s189
      %p193 = pneg %p187
      %p194 = scmp.eq.s32.totalorder %s19, 1
      %p195 = por %p193, %p194
      %p196 = scmp.ne.s32.totalorder %s188, %s191
      %p197 = scmp.eq.s32.totalorder %s19, 0
      %p198 = por %p196, %p197
      %p199 = scmp.ne.s32.totalorder %s188, %s191
      %p200 = scmp.eq.s32.totalorder %s24, 1
      %p201 = por %p199, %p200
      %p202 = scmp.ne.s32.totalorder %s191, %s192
      %p203 = scmp.eq.s32.totalorder %s24, 0
      %p204 = por %p202, %p203
      %p205 = scmp.ne.s32.totalorder %s191, %s192
      %p206 = scmp.eq.s32.totalorder %s25, 1
      %p207 = por %p205, %p206
      %p209 = scmp.ne.s32.totalorder %s192, %s208
      %p210 = scmp.eq.s32.totalorder %s25, 0
      %p211 = por %p209, %p210
      %p212 = scmp.le.s32.totalorder 1, %s19
      %p213 = scmp.lt.s32.totalorder %s19, 3
      %p214 = pnand %p212, %p213
      %p215 = pneg %p214
      // Predicated region
      $region9: #{attention_forward.1} parent=5 // pred_check
        _
      $region10: #{attention_forward.1} parent=5 // pred_check_branch
        %217 = sbr.rel (%p214) target = $region12
      $region11: #{attention_forward.1} parent=5 // pred_region
        %s218 = ssub.s32 %s19, 1
        // Predicated region
        $region13: #{attention_forward.1} parent=11 // pred_check
          %p219 = pneg %p106
        $region14: #{attention_forward.1} parent=11 // pred_check_branch
          %221 = sbr.rel (%p219) target = $region16
        $region15: #{attention_forward.1} parent=11 // pred_region
          _
        $region16: #{attention_forward.1} parent=11 // pred_fallthru
          _
        // Predicated region
        $region17: #{attention_forward.1} parent=11 // pred_check
          %p222 = pneg %p127
        $region18: #{attention_forward.1} parent=11 // pred_check_branch
          %224 = sbr.rel (%p222) target = $region20
        $region19: #{attention_forward.1} parent=11 // pred_region
          _
        $region20: #{attention_forward.1} parent=11 // pred_fallthru
          _
        // Predicated region
        $region21: #{attention_forward.1} parent=11 // pred_check
          %p225 = pneg %p148
        $region22: #{attention_forward.1} parent=11 // pred_check_branch
          %227 = sbr.rel (%p225) target = $region24
        $region23: #{attention_forward.1} parent=11 // pred_region
          _
        $region24: #{attention_forward.1} parent=11 // pred_fallthru
          _
      $region12: #{attention_forward.1} parent=5 // pred_fallthru
        _
      %p228 = scmp.lt.s32.totalorder %s19, 2
      // Predicated region
      $region25: #{attention_forward.1} parent=5 // pred_check
        %p229 = pneg %p228
      $region26: #{attention_forward.1} parent=5 // pred_check_branch
        %231 = sbr.rel (%p229) target = $region28
      $region27: #{attention_forward.1} parent=5 // pred_region
        // Predicated region
        $region29: #{attention_forward.1} parent=27 // pred_check
          %p232 = pneg %p53
        $region30: #{attention_forward.1} parent=27 // pred_check_branch
          %234 = sbr.rel (%p232) target = $region32
        $region31: #{attention_forward.1} parent=27 // pred_region
          %p235 = scmp.lt.s32.totalorder %s26, 1
          %s236 = scalar_select %p235, %s26, 1
          %p237 = scmp.lt.s32.totalorder %s27, 0
          %s238 = scalar_select %p237, %s27, 0
          %s239 = sadd.s32 %s238, %s236
          %s240 = smul.addr %s239, 8
          %s241 = scalar_lea.vmem %s0, %s240
        $region32: #{attention_forward.1} parent=27 // pred_fallthru
          _
        // Predicated region
        $region33: #{attention_forward.1} parent=27 // pred_check
          %p242 = pneg %p79
        $region34: #{attention_forward.1} parent=27 // pred_check_branch
          %244 = sbr.rel (%p242) target = $region36
        $region35: #{attention_forward.1} parent=27 // pred_region
          %p245 = scmp.lt.s32.totalorder %s26, 1
          %s246 = scalar_select %p245, %s26, 1
          %s247 = smul.addr %s246, 8
          %s248 = scalar_lea.vmem %s1, %s247
        $region36: #{attention_forward.1} parent=27 // pred_fallthru
          _
      $region28: #{attention_forward.1} parent=5 // pred_fallthru
        _
      %p249 = scmp.le.s32.totalorder 1, %s19
      %p250 = scmp.lt.s32.totalorder %s19, 3
      %p251 = pnand %p249, %p250
      %p252 = pneg %p251
      // Predicated region
      $region37: #{attention_forward.1} parent=5 // pred_check
        _
      $region38: #{attention_forward.1} parent=5 // pred_check_branch
        %254 = sbr.rel (%p251) target = $region40
      $region39: #{attention_forward.1} parent=5 // pred_region
        %s255 = ssub.s32 %s19, 1
        %p256 = scmp.lt.s32.totalorder %s28, 1
        %s257 = scalar_select %p256, %s28, 1
        %p258 = scmp.lt.s32.totalorder %s29, 0
        %s259 = scalar_select %p258, %s29, 0
        %s260 = sadd.s32 %s259, %s257
        %s261 = smul.addr %s260, 8
        %s262 = scalar_lea.vmem %s0, %s261
        %p263 = pneg %p59
        %p264 = pneg %p56
        %p265 = scmp.lt.s32.totalorder %s28, 1
        %s266 = scalar_select %p265, %s28, 1
        %s267 = smul.addr %s266, 8
        %s268 = scalar_lea.vmem %s1, %s267
        %p269 = pneg %p85
        %p270 = pneg %p82
        %p271 = pneg %p106
        %p272 = pneg %p103
        %p273 = pneg %p127
        %p274 = pneg %p124
        %p275 = pneg %p148
        %p276 = pneg %p145
        %p277 = pneg %p176
        %p278 = pneg %p173
        %s279 = sand.u32 %s163, 1
        %s280 = scalar_lea.sflag [#allocation3], %s279
        %s281 = sand.u32 %s163, 1
        %s282 = smul.addr %s281, 8
        %s283 = scalar_lea.vmem [#allocation2], %s282
        %p284 = pneg %p204
        %p285 = pneg %p201
        %s286 = sand.u32 %s191, 1
        %s287 = scalar_lea.sflag [#allocation5], %s286
        %s288 = sand.u32 %s191, 1
        %s289 = smul.addr %s288, 8
        %s290 = scalar_lea.vmem [#allocation4], %s289
        %p291 = scmp.lt.s32.totalorder %s28, 1
        %s292 = scalar_select %p291, %s28, 1
        %p293 = scmp.lt.s32.totalorder %s29, 0
        %s294 = scalar_select %p293, %s29, 0
        %s295 = sadd.s32 %s294, %s292
        %s296 = smul.addr %s295, 8
        %s297 = scalar_lea.vmem %s0, %s296
        %p298 = scmp.lt.s32.totalorder %s28, 1
        %s299 = scalar_select %p298, %s28, 1
        %s300 = smul.addr %s299, 8
        %s301 = scalar_lea.vmem %s1, %s300
        %v303 = vld [vmem:[%s297] sm:$0xff]
        %v304 = vpack.c.bf16 %v303, %v303
        %v305 = vld [vmem:[%s301] sm:$0xff]
        %v306 = vpack.c.bf16 %v305, %v305
        %v307 = vld [vmem:[%s2] sm:$0xff]
        %v308 = vld [vmem:[%s2 + $0x8] sm:$0xff]
        %v309 = vld [vmem:[%s2 + $0x10] sm:$0xff]
        %v310 = vld [vmem:[%s2 + $0x18] sm:$0xff]
        %v311 = vpack.c.bf16 %v308, %v307
        %v312 = vpack.c.bf16 %v310, %v309
        %v313 = vld [vmem:[%s3] sm:$0xff]
        %v314 = vld [vmem:[%s3 + $0x8] sm:$0xff]
        %v315 = vld [vmem:[%s3 + $0x10] sm:$0xff]
        %v316 = vld [vmem:[%s3 + $0x18] sm:$0xff]
        %v317 = vpack.c.bf16 %v314, %v313
        %v318 = vpack.c.bf16 %v316, %v315
        %v319 = vld [vmem:[%s4] sm:$0xff]
        %v320 = vld [vmem:[%s4 + $0x8] sm:$0xff]
        %v321 = vld [vmem:[%s4 + $0x10] sm:$0xff]
        %v322 = vld [vmem:[%s4 + $0x18] sm:$0xff]
        %v323 = vpack.c.bf16 %v320, %v319
        %v324 = vpack.c.bf16 %v322, %v321
        %vm325 = vcmask 261120
        %v327 = vsel %vm325, %v304, 0
        %v330 = vsel %vm325, %v311, 0
        %v333 = vsel %vm325, %v312, 0
        %335 = vmatprep.subr.bf16.mxu0 0
        %336 = vmatpush1.bf16.xpose.msra.mxu0 0
        %337 = vmatprep.subr.bf16.mxu0 0
        %338 = vmatpush1.bf16.xpose.msra.mxu0 0
        %339 = vmatprep.subr.bf16.mxu0 0
        %340 = vmatpush1.bf16.xpose.msra.mxu0 0
        %341 = vmatprep.subr.bf16.mxu0 0
        %342 = vmatpush1.bf16.xpose.msra.mxu0 0
        %343 = vmatprep.subr.bf16.mxu0 0
        %344 = vmatpush1.bf16.xpose.msra.mxu0 0
        %345 = vmatprep.subr.bf16.mxu0 0
        %346 = vmatpush1.bf16.xpose.msra.mxu0 0
        %347 = vmatprep.subr.bf16.mxu0 0
        %348 = vmatpush1.bf16.xpose.msra.mxu0 %v333
        %349 = vmatprep.subr.bf16.mxu0 0
        %350 = vmatpush1.bf16.xpose.msra.mxu0 %v330
        %351 = vmatprep.subr.bf16.mxu0 0
        %352 = vmatpush2.bf16.xpose.msra.mxu0 0
        %353 = vmatprep.subr.bf16.mxu0 0
        %354 = vmatpush2.bf16.xpose.msra.mxu0 0
        %355 = vmatprep.subr.bf16.mxu0 0
        %356 = vmatpush2.bf16.xpose.msra.mxu0 0
        %357 = vmatprep.subr.bf16.mxu0 0
        %358 = vmatpush2.bf16.xpose.msra.mxu0 0
        %359 = vmatprep.subr.bf16.mxu0 0
        %360 = vmatpush2.bf16.xpose.msra.mxu0 0
        %361 = vmatprep.subr.bf16.mxu0 0
        %362 = vmatpush2.bf16.xpose.msra.mxu0 0
        %363 = vmatprep.subr.bf16.mxu0 0
        %364 = vmatpush2.bf16.xpose.msra.mxu0 0
        %365 = vmatprep.subr.bf16.mxu0 0
        %366 = vmatpush2.bf16.xpose.msra.mxu0 0
        %367 = vmatprep.mubr.bf16.mxu0 0
        %368 = vmatmul.mubr.bf16.gmra.mxu0 %v327
        %v369 = vpop.f32.mrf.mxu0
        %v370 = vadd.f32 0.0, %v369
        %v371 = vpop.f32.mrf.mxu0
        %v372 = vpop.f32.mrf.mxu0
        %v373 = vpop.f32.mrf.mxu0
        %374 = vdwg.mxu0
        %v375 = vpack.c.bf16 %v370, %v370
        %v377 = vsel %vm325, %v375, 0
        %v380 = vsel %vm325, %v306, 0
        %382 = vmatprep.subr.bf16.mxu0 0
        %383 = vmatpush1.bf16.xpose.msra.mxu0 0
        %384 = vmatprep.subr.bf16.mxu0 0
        %385 = vmatpush1.bf16.xpose.msra.mxu0 0
        %386 = vmatprep.subr.bf16.mxu0 0
        %387 = vmatpush1.bf16.xpose.msra.mxu0 0
        %388 = vmatprep.subr.bf16.mxu0 0
        %389 = vmatpush1.bf16.xpose.msra.mxu0 0
        %390 = vmatprep.subr.bf16.mxu0 0
        %391 = vmatpush1.bf16.xpose.msra.mxu0 0
        %392 = vmatprep.subr.bf16.mxu0 0
        %393 = vmatpush1.bf16.xpose.msra.mxu0 0
        %394 = vmatprep.subr.bf16.mxu0 0
        %395 = vmatpush1.bf16.xpose.msra.mxu0 0
        %396 = vmatprep.subr.bf16.mxu0 0
        %397 = vmatpush1.bf16.xpose.msra.mxu0 %v380
        %398 = vmatprep.subr.bf16.mxu0 0
        %399 = vmatpush2.bf16.xpose.msra.mxu0 0
        %400 = vmatprep.subr.bf16.mxu0 0
        %401 = vmatpush2.bf16.xpose.msra.mxu0 0
        %402 = vmatprep.subr.bf16.mxu0 0
        %403 = vmatpush2.bf16.xpose.msra.mxu0 0
        %404 = vmatprep.subr.bf16.mxu0 0
        %405 = vmatpush2.bf16.xpose.msra.mxu0 0
        %406 = vmatprep.subr.bf16.mxu0 0
        %407 = vmatpush2.bf16.xpose.msra.mxu0 0
        %408 = vmatprep.subr.bf16.mxu0 0
        %409 = vmatpush2.bf16.xpose.msra.mxu0 0
        %410 = vmatprep.subr.bf16.mxu0 0
        %411 = vmatpush2.bf16.xpose.msra.mxu0 0
        %412 = vmatprep.subr.bf16.mxu0 0
        %413 = vmatpush2.bf16.xpose.msra.mxu0 0
        %414 = vmatprep.mubr.bf16.mxu0 0
        %415 = vmatmul.mubr.bf16.gmra.mxu0 %v377
        %v416 = vpop.f32.mrf.mxu0
        %v417 = vadd.f32 0.0, %v416
        %v418 = vpop.f32.mrf.mxu0
        %v419 = vpop.f32.mrf.mxu0
        %v420 = vpop.f32.mrf.mxu0
        %421 = vdwg.mxu0
        %vm422 = vcmask 64512
        %v423 = vsel %vm422, %v417, -inf
        %424 = vmax.xlane.f32.xlu0 %v423
        %v425 = vpop.xlane.xlu0 %424
        %v426 = vsub.f32 %v417, %v425
        %v427 = vmul.f32 %v426, 1.442695
        %v428 = vpow.pop %v427
        %v429 = vsel %vm422, %v428, 0.0
        %430 = vadd.xlane.f32.xlu0 %v429
        %v431 = vpop.xlane.xlu0 %430
        %v432 = vrcp.pop %v431
        %v433 = vmul.f32 %v428, %v432
        %v434 = vpack.c.bf16 %v433, %v433
        %v436 = vsel %vm422, %v434, 0
        %vm438 = vcmask 1043456
        %v439 = vsel %vm438, %v306, 0
        %441 = vmatprep.subr.bf16.mxu0 0
        %442 = vmatpush1.bf16.msra.mxu0 0
        %443 = vmatprep.subr.bf16.mxu0 0
        %444 = vmatpush1.bf16.msra.mxu0 0
        %445 = vmatprep.subr.bf16.mxu0 0
        %446 = vmatpush1.bf16.msra.mxu0 0
        %447 = vmatprep.subr.bf16.mxu0 0
        %448 = vmatpush1.bf16.msra.mxu0 0
        %449 = vmatprep.subr.bf16.mxu0 0
        %450 = vmatpush1.bf16.msra.mxu0 0
        %451 = vmatprep.subr.bf16.mxu0 0
        %452 = vmatpush1.bf16.msra.mxu0 0
        %453 = vmatprep.subr.bf16.mxu0 0
        %454 = vmatpush1.bf16.msra.mxu0 0
        %455 = vmatprep.subr.bf16.mxu0 0
        %456 = vmatpush1.bf16.msra.mxu0 %v439
        %457 = vmatprep.subr.bf16.mxu0 0
        %458 = vmatpush2.bf16.msra.mxu0 0
        %459 = vmatprep.subr.bf16.mxu0 0
        %460 = vmatpush2.bf16.msra.mxu0 0
        %461 = vmatprep.subr.bf16.mxu0 0
        %462 = vmatpush2.bf16.msra.mxu0 0
        %463 = vmatprep.subr.bf16.mxu0 0
        %464 = vmatpush2.bf16.msra.mxu0 0
        %465 = vmatprep.subr.bf16.mxu0 0
        %466 = vmatpush2.bf16.msra.mxu0 0
        %467 = vmatprep.subr.bf16.mxu0 0
        %468 = vmatpush2.bf16.msra.mxu0 0
        %469 = vmatprep.subr.bf16.mxu0 0
        %470 = vmatpush2.bf16.msra.mxu0 0
        %471 = vmatprep.subr.bf16.mxu0 0
        %472 = vmatpush2.bf16.msra.mxu0 0
        %473 = vmatprep.mubr.bf16.mxu0 0
        %474 = vmatmul.mubr.bf16.gmra.mxu0 %v436
        %v475 = vpop.f32.mrf.mxu0
        %v476 = vadd.f32 0.0, %v475
        %v477 = vpop.f32.mrf.mxu0
        %v478 = vpop.f32.mrf.mxu0
        %v479 = vpop.f32.mrf.mxu0
        %480 = vdwg.mxu0
        %v481 = vpack.c.bf16 %v476, %v476
        %v483 = vsel %vm325, %v323, 0
        %v486 = vsel %vm325, %v324, 0
        %488 = vmatprep.subr.bf16.mxu0 0
        %489 = vmatpush1.bf16.xpose.msra.mxu0 0
        %490 = vmatprep.subr.bf16.mxu0 0
        %491 = vmatpush1.bf16.xpose.msra.mxu0 0
        %492 = vmatprep.subr.bf16.mxu0 0
        %493 = vmatpush1.bf16.xpose.msra.mxu0 0
        %494 = vmatprep.subr.bf16.mxu0 0
        %495 = vmatpush1.bf16.xpose.msra.mxu0 0
        %496 = vmatprep.subr.bf16.mxu0 0
        %497 = vmatpush1.bf16.xpose.msra.mxu0 0
        %498 = vmatprep.subr.bf16.mxu0 0
        %499 = vmatpush1.bf16.xpose.msra.mxu0 0
        %500 = vmatprep.subr.bf16.mxu0 0
        %501 = vmatpush1.bf16.xpose.msra.mxu0 %v486
        %502 = vmatprep.subr.bf16.mxu0 0
        %503 = vmatpush1.bf16.xpose.msra.mxu0 %v483
        %504 = vmatprep.subr.bf16.mxu0 0
        %505 = vmatpush2.bf16.xpose.msra.mxu0 0
        %506 = vmatprep.subr.bf16.mxu0 0
        %507 = vmatpush2.bf16.xpose.msra.mxu0 0
        %508 = vmatprep.subr.bf16.mxu0 0
        %509 = vmatpush2.bf16.xpose.msra.mxu0 0
        %510 = vmatprep.subr.bf16.mxu0 0
        %511 = vmatpush2.bf16.xpose.msra.mxu0 0
        %512 = vmatprep.subr.bf16.mxu0 0
        %513 = vmatpush2.bf16.xpose.msra.mxu0 0
        %514 = vmatprep.subr.bf16.mxu0 0
        %515 = vmatpush2.bf16.xpose.msra.mxu0 0
        %516 = vmatprep.subr.bf16.mxu0 0
        %517 = vmatpush2.bf16.xpose.msra.mxu0 0
        %518 = vmatprep.subr.bf16.mxu0 0
        %519 = vmatpush2.bf16.xpose.msra.mxu0 0
        %520 = vmatprep.mubr.bf16.mxu0 0
        %521 = vmatmul.mubr.bf16.gmra.mxu0 %v377
        %v522 = vpop.f32.mrf.mxu0
        %v523 = vadd.f32 0.0, %v522
        %v524 = vpop.f32.mrf.mxu0
        %v525 = vpop.f32.mrf.mxu0
        %v526 = vpop.f32.mrf.mxu0
        %527 = vdwg.mxu0
        %v529 = vsel %vm325, %v481, 0
        %v532 = vsel %vm325, %v317, 0
        %v535 = vsel %vm325, %v318, 0
        %537 = vmatprep.subr.bf16.mxu0 0
        %538 = vmatpush1.bf16.xpose.msra.mxu0 0
        %539 = vmatprep.subr.bf16.mxu0 0
        %540 = vmatpush1.bf16.xpose.msra.mxu0 0
        %541 = vmatprep.subr.bf16.mxu0 0
        %542 = vmatpush1.bf16.xpose.msra.mxu0 0
        %543 = vmatprep.subr.bf16.mxu0 0
        %544 = vmatpush1.bf16.xpose.msra.mxu0 0
        %545 = vmatprep.subr.bf16.mxu0 0
        %546 = vmatpush1.bf16.xpose.msra.mxu0 0
        %547 = vmatprep.subr.bf16.mxu0 0
        %548 = vmatpush1.bf16.xpose.msra.mxu0 0
        %549 = vmatprep.subr.bf16.mxu0 0
        %550 = vmatpush1.bf16.xpose.msra.mxu0 %v535
        %551 = vmatprep.subr.bf16.mxu0 0
        %552 = vmatpush1.bf16.xpose.msra.mxu0 %v532
        %553 = vmatprep.subr.bf16.mxu0 0
        %554 = vmatpush2.bf16.xpose.msra.mxu0 0
        %555 = vmatprep.subr.bf16.mxu0 0
        %556 = vmatpush2.bf16.xpose.msra.mxu0 0
        %557 = vmatprep.subr.bf16.mxu0 0
        %558 = vmatpush2.bf16.xpose.msra.mxu0 0
        %559 = vmatprep.subr.bf16.mxu0 0
        %560 = vmatpush2.bf16.xpose.msra.mxu0 0
        %561 = vmatprep.subr.bf16.mxu0 0
        %562 = vmatpush2.bf16.xpose.msra.mxu0 0
        %563 = vmatprep.subr.bf16.mxu0 0
        %564 = vmatpush2.bf16.xpose.msra.mxu0 0
        %565 = vmatprep.subr.bf16.mxu0 0
        %566 = vmatpush2.bf16.xpose.msra.mxu0 0
        %567 = vmatprep.subr.bf16.mxu0 0
        %568 = vmatpush2.bf16.xpose.msra.mxu0 0
        %569 = vmatprep.mubr.bf16.mxu0 0
        %570 = vmatmul.mubr.bf16.gmra.mxu0 %v529
        %v571 = vpop.f32.mrf.mxu0
        %v572 = vadd.f32 %v523, %v571
        %v573 = vpop.f32.mrf.mxu0
        %v574 = vpop.f32.mrf.mxu0
        %v575 = vpop.f32.mrf.mxu0
        %576 = vdwg.mxu0
        %v577 = vtanh.pop %v572
        %578 = vst.msk [vmem:[%s283] sm:$0xff] %vm325, %v577
        %579 = vst.msk [vmem:[%s290] sm:$0xff] %vm422, %v433
        %s580 = sand.u32 %s163, 1
        %s581 = scalar_lea.sflag [#allocation3], %s580
        %s582 = sand.u32 %s163, 1
        %s583 = smul.addr %s582, 8
        %s584 = scalar_lea.vmem [#allocation2], %s583
        %s585 = sand.u32 %s191, 1
        %s586 = scalar_lea.sflag [#allocation5], %s585
        %s587 = sand.u32 %s191, 1
        %s588 = smul.addr %s587, 8
        %s589 = scalar_lea.vmem [#allocation4], %s588
        // Predicated region
        $region41: #{attention_forward.1} parent=39 // pred_check
          %p590 = pneg %p173
        $region42: #{attention_forward.1} parent=39 // pred_check_branch
          %592 = sbr.rel (%p590) target = $region44
        $region43: #{attention_forward.1} parent=39 // pred_region
          %s594 = ssub.s32 128, 128
          %595 = vsyncadd %s581, %s594
          %s596 = sadd.s32 %s29, %s28
          %s597 = smul.addr %s596, 128
          %s598 = scalar_lea.hbm %s5, %s597
          %s600 = sshll.u32 %s584, 4
          %s601 = int_to_ptr.vmem [resolvable:$true] %s600
          %603 = dma.vmem_to_hbm [thread:$0]  %s601, 128, %s598, %s581
        $region44: #{attention_forward.1} parent=39 // pred_fallthru
          _
        // Predicated region
        $region45: #{attention_forward.1} parent=39 // pred_check
          %p604 = pneg %p201
        $region46: #{attention_forward.1} parent=39 // pred_check_branch
          %606 = sbr.rel (%p604) target = $region48
        $region47: #{attention_forward.1} parent=39 // pred_region
          %s608 = ssub.s32 128, 128
          %609 = vsyncadd %s586, %s608
          %s610 = sadd.s32 %s29, %s28
          %s611 = smul.addr %s610, 128
          %s612 = scalar_lea.hbm %s6, %s611
          %s614 = sshll.u32 %s589, 4
          %s615 = int_to_ptr.vmem [resolvable:$true] %s614
          %617 = dma.vmem_to_hbm [thread:$0]  %s615, 128, %s612, %s586
        $region48: #{attention_forward.1} parent=39 // pred_fallthru
          _
      $region40: #{attention_forward.1} parent=5 // pred_fallthru
        _
      %p618 = scmp.le.s32.totalorder 2, %s19
      // Predicated region
      $region49: #{attention_forward.1} parent=5 // pred_check
        %p619 = pneg %p618
      $region50: #{attention_forward.1} parent=5 // pred_check_branch
        %621 = sbr.rel (%p619) target = $region52
      $region51: #{attention_forward.1} parent=5 // pred_region
        %s622 = ssub.s32 %s19, 2
        // Predicated region
        $region53: #{attention_forward.1} parent=51 // pred_check
          %p623 = pneg %p179
        $region54: #{attention_forward.1} parent=51 // pred_check_branch
          %625 = sbr.rel (%p623) target = $region56
        $region55: #{attention_forward.1} parent=51 // pred_region
          %s626 = sand.u32 %s164, 1
          %s627 = scalar_lea.sflag [#allocation3], %s626
          %s628 = sand.u32 %s164, 1
          %s629 = smul.addr %s628, 8
          %s630 = scalar_lea.vmem [#allocation2], %s629
          %631 = dma.done %s627, 128
        $region56: #{attention_forward.1} parent=51 // pred_fallthru
          _
        // Predicated region
        $region57: #{attention_forward.1} parent=51 // pred_check
          %p632 = pneg %p207
        $region58: #{attention_forward.1} parent=51 // pred_check_branch
          %634 = sbr.rel (%p632) target = $region60
        $region59: #{attention_forward.1} parent=51 // pred_region
          %s635 = sand.u32 %s192, 1
          %s636 = scalar_lea.sflag [#allocation5], %s635
          %s637 = sand.u32 %s192, 1
          %s638 = smul.addr %s637, 8
          %s639 = scalar_lea.vmem [#allocation4], %s638
          %640 = dma.done %s636, 128
        $region60: #{attention_forward.1} parent=51 // pred_fallthru
          _
      $region52: #{attention_forward.1} parent=5 // pred_fallthru
        _
    $region6: #{attention_forward.1} parent=1 // loop_footer
      %s23 = sadd.s32 1, %s19
    $region7: #{attention_forward.1} parent=1 // loop_footer_branch
      %18 = sbr.rel target = $region3
    $region8: #{attention_forward.1} parent=1 // loop_exit
      _
    %641 = vsyncpa [#allocation3], 1
    %s642 = scalar_lea.sflag [#allocation3], 1
    %643 = vsyncpa %s642, 1
    %644 = vsyncpa [#allocation5], 1
    %s645 = scalar_lea.sflag [#allocation5], 1
    %646 = vsyncpa %s645, 1

</llo_original>
